<compile_context>
chip_gen: v7x
topology: tpu7x:2x2x1
jax: 0.10.0
libtpu: 0.0.40
codegen_flags: <defaults>
</compile_context>

<pallas_src>
import functools

import jax
import jax.numpy as jnp
from jax.experimental import pallas as pl
from jax.experimental.pallas import tpu as pltpu


def confidence_kernel(x_ref, wband_ref, b_ref, o_ref):
    # x_ref    : (tr, 128) VMEM block of the flat x view; lane c of a row holds
    #            feature c % N of batch element row*(128//N) + c//N.
    # wband_ref: (128, 128//N) VMEM banded weights, resident across the grid.
    # b_ref    : (1,)  SMEM bias scalar.
    # o_ref    : (tr, 128//N) output block, rows/cols already in batch order.
    acc = jnp.dot(x_ref[...], wband_ref[...],
                  preferred_element_type=jnp.float32)      # MXU, f32 accumulate
    o_ref[...] = jax.nn.sigmoid(acc + b_ref[0]).astype(o_ref.dtype)


@functools.partial(jax.jit, static_argnames=("tr",))
def _confidence_pallas(x_flat, wband, b_vec, *, tr):
    g, lanes = x_flat.shape                    # lanes == 128
    m_out = wband.shape[1]                     # 128 // n_agents
    grid = (pl.cdiv(g, tr),)

    # Double-buffered VMEM footprint (output lane-pads to 128 in VMEM).
    in_buf = tr * lanes * x_flat.dtype.itemsize
    out_buf = tr * 128 * 4
    vmem_need = 2 * (in_buf + out_buf) + wband.size * wband.dtype.itemsize + (1 << 20)
    vmem_limit = int(min(max(vmem_need + (8 << 20), 16 << 20), 50 << 20))

    return pl.pallas_call(
        confidence_kernel,
        out_shape=jax.ShapeDtypeStruct((g, m_out), x_flat.dtype),
        grid_spec=pltpu.PrefetchScalarGridSpec(
            num_scalar_prefetch=0,
            grid=grid,
            in_specs=[
                pl.BlockSpec((tr, lanes), lambda i: (i, 0)),     # x rows, lane-dense
                pl.BlockSpec((lanes, m_out), lambda i: (0, 0)),  # resident weights
                pl.BlockSpec(memory_space=pltpu.SMEM),           # bias scalar
            ],
            out_specs=pl.BlockSpec((tr, m_out), lambda i: (i, 0)),
        ),
        compiler_params=pltpu.CompilerParams(
            dimension_semantics=("parallel",),        # shard rows across v7x TCs
            vmem_limit_bytes=vmem_limit,
        ),
    )(x_flat, wband, b_vec)


def confidence_forward(x, w, b, *, rows_per_step=8192, use_kernel=None):
    """sigmoid(x @ w + b) with x: (B, n_agents), w: (n_agents, 1), b: (1,)."""
    B, N = x.shape
    w_vec = jnp.asarray(w).reshape(N).astype(jnp.float32)
    b_vec = jnp.asarray(b).reshape(1).astype(jnp.float32)

    layout_ok = (N <= 128) and (128 % N == 0) and ((B * N) % 128 == 0)
    if use_kernel is None:
        # Only route to Pallas when it is the single streaming pass over a
        # large, layout-compatible x; small problems stay on fused XLA.
        use_kernel = layout_ok and B >= 131072
    if not (use_kernel and layout_ok):
        return jax.nn.sigmoid(x @ w_vec.astype(x.dtype).reshape(N, 1)
                              + b_vec.astype(x.dtype))

    m_out = 128 // N                 # batch elements per 128-lane row
    g = (B * N) // 128               # rows of the flat view

    # Banded weights: wband[c, m] = w[c % N] if c // N == m else 0.
    wband = (jnp.eye(m_out, dtype=jnp.float32)[:, None, :]
             * w_vec[None, :, None]).reshape(128, m_out).astype(x.dtype)

    # Free contiguous reshape -- no transpose, no pad, no extra HBM pass.
    x_flat = x.reshape(g, 128)

    # Row tile: multiple of 8 sublanes, large (default 8192 rows = 4 MB of f32
    # x per step), clamped so the grid keeps >=2 steps and VMEM stays bounded.
    if g <= 8:
        tr = g
    else:
        half_rows = ((-(-g // 2)) + 7) // 8 * 8
        tr = max(8, min((min(rows_per_step, 16384) // 8) * 8, half_rows))

    out = _confidence_pallas(x_flat, wband, b_vec, tr=tr)    # (g, m_out)
    return out.reshape(B, 1)          # free: already in batch order


if __name__ == "__main__":
    n_agents = 4
    batch = 2048        # (batch * n_agents) / 128 = 64 rows -> 2-step grid

    key = jax.random.PRNGKey(0)
    kx, kw, kb = jax.random.split(key, 3)

    # Small-integer / dyadic inputs keep the linear part exactly representable
    # at any MXU precision mode, so the check below is precision-robust.
    x = jax.random.randint(kx, (batch, n_agents), -8, 8).astype(jnp.float32)
    w = jax.random.randint(kw, (n_agents, 1), -8, 8).astype(jnp.float32) / 16.0
    b = jax.random.randint(kb, (1,), -8, 8).astype(jnp.float32) / 16.0

    out = confidence_forward(x, w, b, use_kernel=True)   # force the Pallas path
    jax.block_until_ready(out)

    # Exact f32 reference (same math as the PyTorch forward).
    ref = jax.nn.sigmoid(jnp.sum(x * w.reshape(1, n_agents), axis=1,
                                 keepdims=True) + b)
    assert out.shape == (batch, 1)
    assert jnp.allclose(out, ref, atol=1e-5), "mismatch vs reference"

    print("KERNEL_OK")
</pallas_src>

<mosaic_0001>
module attributes {stable_mosaic.version = 11 : i64} {
  func.func @confidence_kernel(%arg0: i32, %arg1: memref<32x128xf32, #tpu.memory_space<vmem>>, %arg2: memref<128x32xf32, #tpu.memory_space<vmem>>, %arg3: memref<1xf32, #tpu.memory_space<smem>>, %arg4: memref<32x32xf32, #tpu.memory_space<vmem>>) attributes {dimension_semantics = [#tpu.dimension_semantics<parallel>], iteration_bounds = array<i64: 2>, scalar_prefetch = 0 : i64, scratch_operands = 0 : i64, tpu.core_type = #tpu.core_type<tc>, window_params = [{transform_indices = @transform_0, window_bounds = array<i64: 32, 128>}, {pipeline_mode = #tpu.pipeline_mode<synchronous>, transform_indices = @transform_1, window_bounds = array<i64: 128, 32>}, {transform_indices = @transform_2, window_bounds = array<i64: 1>}, {transform_indices = @transform_3, window_bounds = array<i64: 32, 32>}]} {
    %c0 = arith.constant 0 : index
    %c0_0 = arith.constant 0 : index
    %0 = vector.load %arg1[%c0, %c0_0] : memref<32x128xf32, #tpu.memory_space<vmem>>, vector<32x128xf32>
    %c0_1 = arith.constant 0 : index
    %c0_2 = arith.constant 0 : index
    %1 = vector.load %arg2[%c0_1, %c0_2] : memref<128x32xf32, #tpu.memory_space<vmem>>, vector<128x32xf32>
    %cst = arith.constant dense<0.000000e+00> : vector<32x32xf32>
    %2 = tpu.matmul %0, %1, %cst {dimension_numbers = #tpu.dot_dimension_numbers<[1], [0], [0], [1], [0, 0, 1, 1], [], []>} : vector<32x128xf32>, vector<128x32xf32>, vector<32x32xf32> -> vector<32x32xf32>
    %c0_3 = arith.constant 0 : index
    %3 = memref.load %arg3[%c0_3] : memref<1xf32, #tpu.memory_space<smem>>
    %4 = vector.broadcast %3 : f32 to vector<32x32xf32>
    %5 = arith.addf %2, %4 : vector<32x32xf32>
    %6 = arith.negf %5 : vector<32x32xf32>
    %7 = math.exp %6 : vector<32x32xf32>
    %cst_4 = arith.constant 1.000000e+00 : f32
    %8 = vector.broadcast %cst_4 : f32 to vector<32x32xf32>
    %9 = arith.addf %8, %7 : vector<32x32xf32>
    %10 = arith.divf %8, %9 : vector<32x32xf32>
    %c0_5 = arith.constant 0 : index
    %c0_6 = arith.constant 0 : index
    %11 = vector.load %arg4[%c0_5, %c0_6] : memref<32x32xf32, #tpu.memory_space<vmem>>, vector<32x32xf32>
    tpu.vector_store %arg4[%c0_5, %c0_6], %10 {strides = array<i32>} : memref<32x32xf32, #tpu.memory_space<vmem>>, vector<32x32xf32>,
    return
  }
  func.func @transform_0(%arg0: i32) -> (i32, i32) {
    %c0_i32 = arith.constant 0 : i32
    %c0_i32_0 = arith.constant 0 : i32
    return %arg0, %c0_i32 : i32, i32
  }
  func.func @transform_1(%arg0: i32) -> (i32, i32) {
    %c0_i32 = arith.constant 0 : i32
    %c0_i32_0 = arith.constant 0 : i32
    %c0_i32_1 = arith.constant 0 : i32
    return %c0_i32, %c0_i32_0 : i32, i32
  }
  func.func @transform_2(%arg0: i32) -> i32 {
    %c0_i32 = arith.constant 0 : i32
    %c0_i32_0 = arith.constant 0 : i32
    return %c0_i32 : i32
  }
  func.func @transform_3(%arg0: i32) -> (i32, i32) {
    %c0_i32 = arith.constant 0 : i32
    %c0_i32_0 = arith.constant 0 : i32
    return %arg0, %c0_i32 : i32, i32
  }
}

</mosaic_0001>

<llo_original>
// kernel: _confidence_pallas.1
$region0: #{_confidence_pallas.1}
  #allocation0 [shape = 'u32[]', space=smem, size = 0x4, offset = 0x4, fixed_abs, tag = 'smem constant byte address 0x4 - core index']
  #allocation1 [shape = 'u32[144,128]{1,0:T(1,128)}', space=vmem, size = 0x12000, scoped, tag = 'internal scratch']
  #allocation2 [shape = 'f32[1]{0:T(128)S(6)}', space=smem, size = 0x200, scoped, tag = 'scoped memory for _confidence_pallas.1']
  %s0 = inlined_call_operand.vmem [shape: f32[64,128], index: 0, kind: input, shape index: {}]
  %s1 = inlined_call_operand.vmem [shape: f32[128,32], index: 1, kind: input, shape index: {}]
  %s2 = inlined_call_operand.<no memory space> [shape: f32[1], index: 2, kind: input, shape index: {}]
  %s3 = inlined_call_operand.vmem [shape: f32[64,32], index: 3, kind: output, shape index: {}]
  %s4 = sld [smem:[#allocation0]]
  $region45: #{_confidence_pallas.1} parent=0
    _
  %s6 = ssub.s32 1, %s4
  %s7 = scalar_select 0, %s6, %s4
  %8 = sst [smem:[#allocation2]] %s2
  loop: start=0, step=1, limit=4
  $region2: #{_confidence_pallas.1} parent=0 // loop_pre_header
    _
  $region3: #{_confidence_pallas.1} parent=0 // loop_header
    %s10 = sphi 0, %s14
    %p11 = scmp.ge.s32.totalorder %s10, 4
    %s20 = sphi 0, %s22
    %s23 = sphi 0, %s20
    %s24 = sphi 0, %s23
    %s40 = sphi 0, %s24
    %s44 = sphi 0, %s44
    %s46 = sphi 0, %s44
    %s47 = sphi 0, %s46
    %s61 = sphi 0, %s47
    %s65 = sphi 0, %s65
    %s67 = sphi 0, %s65
    %s68 = sphi 0, %s67
    %s82 = sphi 0, %s68
    %s88 = sphi 0, %s90
    %s91 = sphi 0, %s88
    %s92 = sphi 0, %s91
    %s108 = sphi 0, %s92
  $region4: #{_confidence_pallas.1} parent=0 // loop_header_branch
    %13 = sbr.rel (%p11) target = $region8
  $region5: #{_confidence_pallas.1} parent=0 // loop_body
    %s15 = ssub.s32 %s10, 1
    %s16 = ssub.s32 %s10, 2
    %s17 = sadd.s32 %s10, 1
    %s18 = ssub.s32 %s10, %s17
    %p19 = scmp.eq.s32.totalorder %s18, 0
    %s21 = sadd.s32 %s20, 1
    %s22 = scalar_select %p19, %s20, %s21
    %p25 = pneg %p19
    %p26 = scmp.eq.s32.totalorder %s10, 1
    %p27 = por %p25, %p26
    %p28 = scmp.ne.s32.totalorder %s20, %s23
    %p29 = scmp.eq.s32.totalorder %s10, 0
    %p30 = por %p28, %p29
    %p31 = scmp.ne.s32.totalorder %s20, %s23
    %p32 = scmp.eq.s32.totalorder %s15, 1
    %p33 = por %p31, %p32
    %p34 = scmp.ne.s32.totalorder %s23, %s24
    %p35 = scmp.eq.s32.totalorder %s15, 0
    %p36 = por %p34, %p35
    %p37 = scmp.ne.s32.totalorder %s23, %s24
    %p38 = scmp.eq.s32.totalorder %s16, 1
    %p39 = por %p37, %p38
    %p41 = scmp.ne.s32.totalorder %s24, %s40
    %p42 = scmp.eq.s32.totalorder %s16, 0
    %p43 = por %p41, %p42
    %s45 = sadd.s32 %s44, 1
    %p48 = scmp.eq.s32.totalorder %s10, 1
    %p49 = scmp.ne.s32.totalorder %s44, %s46
    %p50 = scmp.eq.s32.totalorder %s10, 0
    %p51 = por %p49, %p50
    %p52 = scmp.ne.s32.totalorder %s44, %s46
    %p53 = scmp.eq.s32.totalorder %s15, 1
    %p54 = por %p52, %p53
    %p55 = scmp.ne.s32.totalorder %s46, %s47
    %p56 = scmp.eq.s32.totalorder %s15, 0
    %p57 = por %p55, %p56
    %p58 = scmp.ne.s32.totalorder %s46, %s47
    %p59 = scmp.eq.s32.totalorder %s16, 1
    %p60 = por %p58, %p59
    %p62 = scmp.ne.s32.totalorder %s47, %s61
    %p63 = scmp.eq.s32.totalorder %s16, 0
    %p64 = por %p62, %p63
    %s66 = sadd.s32 %s65, 1
    %p69 = scmp.eq.s32.totalorder %s10, 1
    %p70 = scmp.ne.s32.totalorder %s65, %s67
    %p71 = scmp.eq.s32.totalorder %s10, 0
    %p72 = por %p70, %p71
    %p73 = scmp.ne.s32.totalorder %s65, %s67
    %p74 = scmp.eq.s32.totalorder %s15, 1
    %p75 = por %p73, %p74
    %p76 = scmp.ne.s32.totalorder %s67, %s68
    %p77 = scmp.eq.s32.totalorder %s15, 0
    %p78 = por %p76, %p77
    %p79 = scmp.ne.s32.totalorder %s67, %s68
    %p80 = scmp.eq.s32.totalorder %s16, 1
    %p81 = por %p79, %p80
    %p83 = scmp.ne.s32.totalorder %s68, %s82
    %p84 = scmp.eq.s32.totalorder %s16, 0
    %p85 = por %p83, %p84
    %s86 = ssub.s32 %s10, %s17
    %p87 = scmp.eq.s32.totalorder %s86, 0
    %s89 = sadd.s32 %s88, 1
    %s90 = scalar_select %p87, %s88, %s89
    %p93 = pneg %p87
    %p94 = scmp.eq.s32.totalorder %s10, 1
    %p95 = por %p93, %p94
    %p96 = scmp.ne.s32.totalorder %s88, %s91
    %p97 = scmp.eq.s32.totalorder %s10, 0
    %p98 = por %p96, %p97
    %p99 = scmp.ne.s32.totalorder %s88, %s91
    %p100 = scmp.eq.s32.totalorder %s15, 1
    %p101 = por %p99, %p100
    %p102 = scmp.ne.s32.totalorder %s91, %s92
    %p103 = scmp.eq.s32.totalorder %s15, 0
    %p104 = por %p102, %p103
    %p105 = scmp.ne.s32.totalorder %s91, %s92
    %p106 = scmp.eq.s32.totalorder %s16, 1
    %p107 = por %p105, %p106
    %p109 = scmp.ne.s32.totalorder %s92, %s108
    %p110 = scmp.eq.s32.totalorder %s16, 0
    %p111 = por %p109, %p110
    %p112 = scmp.le.s32.totalorder 1, %s10
    %p113 = scmp.lt.s32.totalorder %s10, 3
    %p114 = pnand %p112, %p113
    %p115 = pneg %p114
    // Predicated region
    $region9: #{_confidence_pallas.1} parent=5 // pred_check
      _
    $region10: #{_confidence_pallas.1} parent=5 // pred_check_branch
      %117 = sbr.rel (%p114) target = $region12
    $region11: #{_confidence_pallas.1} parent=5 // pred_region
      %s118 = ssub.s32 %s10, 1
      // Predicated region
      $region13: #{_confidence_pallas.1} parent=11 // pred_check
        %p119 = pneg %p57
      $region14: #{_confidence_pallas.1} parent=11 // pred_check_branch
        %121 = sbr.rel (%p119) target = $region16
      $region15: #{_confidence_pallas.1} parent=11 // pred_region
        _
      $region16: #{_confidence_pallas.1} parent=11 // pred_fallthru
        _
      // Predicated region
      $region17: #{_confidence_pallas.1} parent=11 // pred_check
        %p122 = pneg %p78
      $region18: #{_confidence_pallas.1} parent=11 // pred_check_branch
        %124 = sbr.rel (%p122) target = $region20
      $region19: #{_confidence_pallas.1} parent=11 // pred_region
        _
      $region20: #{_confidence_pallas.1} parent=11 // pred_fallthru
        _
    $region12: #{_confidence_pallas.1} parent=5 // pred_fallthru
      _
    %p125 = scmp.lt.s32.totalorder %s10, 2
    // Predicated region
    $region21: #{_confidence_pallas.1} parent=5 // pred_check
      %p126 = pneg %p125
    $region22: #{_confidence_pallas.1} parent=5 // pred_check_branch
      %128 = sbr.rel (%p126) target = $region24
    $region23: #{_confidence_pallas.1} parent=5 // pred_region
      // Predicated region
      $region25: #{_confidence_pallas.1} parent=23 // pred_check
        %p129 = pneg %p30
      $region26: #{_confidence_pallas.1} parent=23 // pred_check_branch
        %131 = sbr.rel (%p129) target = $region28
      $region27: #{_confidence_pallas.1} parent=23 // pred_region
        %s132 = smul.u32 4, %s10
        %p133 = scmp.lt.s32.totalorder %s132, 7
        %s134 = scalar_select %p133, %s132, 7
        %s135 = smul.addr %s134, 8
        %s136 = scalar_lea.vmem %s0, %s135
        %s137 = smul.u32 4, %s10
      $region28: #{_confidence_pallas.1} parent=23 // pred_fallthru
        _
    $region24: #{_confidence_pallas.1} parent=5 // pred_fallthru
      _
    %p138 = scmp.le.s32.totalorder 1, %s10
    %p139 = scmp.lt.s32.totalorder %s10, 3
    %p140 = pnand %p138, %p139
    %p141 = pneg %p140
    // Predicated region
    $region29: #{_confidence_pallas.1} parent=5 // pred_check
      _
    $region30: #{_confidence_pallas.1} parent=5 // pred_check_branch
      %143 = sbr.rel (%p140) target = $region32
    $region31: #{_confidence_pallas.1} parent=5 // pred_region
      %s144 = ssub.s32 %s10, 1
      %s145 = smul.u32 4, %s15
      %p146 = scmp.lt.s32.totalorder %s145, 7
      %s147 = scalar_select %p146, %s145, 7
      %s148 = smul.addr %s147, 8
      %s149 = scalar_lea.vmem %s0, %s148
      %p150 = pneg %p36
      %p151 = pneg %p33
      %p152 = pneg %p57
      %p153 = pneg %p54
      %p154 = pneg %p78
      %p155 = pneg %p75
      %p156 = pneg %p104
      %p157 = pneg %p101
      %s158 = smul.u32 4, %s15
      %p159 = scmp.lt.s32.totalorder %s158, 7
      %s160 = scalar_select %p159, %s158, 7
      %s161 = smul.addr %s160, 8
      %s162 = scalar_lea.vmem %s3, %s161
      %s163 = smul.u32 4, %s15
      %p164 = scmp.lt.s32.totalorder %s163, 7
      %s165 = scalar_select %p164, %s163, 7
      %s166 = smul.addr %s165, 8
      %s167 = scalar_lea.vmem %s0, %s166
      %s168 = smul.u32 4, %s15
      %s169 = smul.u32 4, %s15
      %p170 = scmp.lt.s32.totalorder %s169, 7
      %s171 = scalar_select %p170, %s169, 7
      %s172 = smul.addr %s171, 8
      %s173 = scalar_lea.vmem %s3, %s172
      %s174 = smul.u32 4, %s15
      %v175 = vld [vmem:[%s167] sm:$0xff]
      %v176 = vld [vmem:[%s167 + $0x8] sm:$0xff]
      %v177 = vld [vmem:[%s167 + $0x10] sm:$0xff]
      %v178 = vld [vmem:[%s167 + $0x18] sm:$0xff]
      %v179 = vld [vmem:[%s1] sm:$0xff]
      %v180 = vld [vmem:[%s1 + $0x8] sm:$0xff]
      %v181 = vld [vmem:[%s1 + $0x10] sm:$0xff]
      %v182 = vld [vmem:[%s1 + $0x18] sm:$0xff]
      %v183 = vld [vmem:[%s1 + $0x20] sm:$0xff]
      %v184 = vld [vmem:[%s1 + $0x28] sm:$0xff]
      %v185 = vld [vmem:[%s1 + $0x30] sm:$0xff]
      %v186 = vld [vmem:[%s1 + $0x38] sm:$0xff]
      %v187 = vld [vmem:[%s1 + $0x40] sm:$0xff]
      %v188 = vld [vmem:[%s1 + $0x48] sm:$0xff]
      %v189 = vld [vmem:[%s1 + $0x50] sm:$0xff]
      %v190 = vld [vmem:[%s1 + $0x58] sm:$0xff]
      %v191 = vld [vmem:[%s1 + $0x60] sm:$0xff]
      %v192 = vld [vmem:[%s1 + $0x68] sm:$0xff]
      %v193 = vld [vmem:[%s1 + $0x70] sm:$0xff]
      %v194 = vld [vmem:[%s1 + $0x78] sm:$0xff]
      %s195 = sld [smem:[#allocation2]]
      %v196 = vstv %s195
      %197 = vmatprep.subr.mxu0 0.0
      %198 = vmatpush1.msra.mxu0 %v179
      %199 = vmatprep.subr.mxu0 0.0
      %200 = vmatpush1.msra.mxu0 %v180
      %201 = vmatprep.subr.mxu0 0.0
      %202 = vmatpush1.msra.mxu0 %v181
      %203 = vmatprep.subr.mxu0 0.0
      %204 = vmatpush1.msra.mxu0 %v182
      %205 = vmatprep.subr.mxu0 0.0
      %206 = vmatpush1.msra.mxu0 %v183
      %207 = vmatprep.subr.mxu0 0.0
      %208 = vmatpush1.msra.mxu0 %v184
      %209 = vmatprep.subr.mxu0 0.0
      %210 = vmatpush1.msra.mxu0 %v185
      %211 = vmatprep.subr.mxu0 0.0
      %212 = vmatpush1.msra.mxu0 %v186
      %213 = vmatprep.subr.mxu0 0.0
      %214 = vmatpush1.msra.mxu0 %v187
      %215 = vmatprep.subr.mxu0 0.0
      %216 = vmatpush1.msra.mxu0 %v188
      %217 = vmatprep.subr.mxu0 0.0
      %218 = vmatpush1.msra.mxu0 %v189
      %219 = vmatprep.subr.mxu0 0.0
      %220 = vmatpush1.msra.mxu0 %v190
      %221 = vmatprep.subr.mxu0 0.0
      %222 = vmatpush1.msra.mxu0 %v191
      %223 = vmatprep.subr.mxu0 0.0
      %224 = vmatpush1.msra.mxu0 %v192
      %225 = vmatprep.subr.mxu0 0.0
      %226 = vmatpush1.msra.mxu0 %v193
      %227 = vmatprep.subr.mxu0 0.0
      %228 = vmatpush1.msra.mxu0 %v194
      %229 = vmatprep.subr.mxu0 0.0
      %230 = vmatpush1.msra.mxu0 0.0
      %231 = vmatprep.subr.mxu0 0.0
      %232 = vmatpush1.msra.mxu0 0.0
      %233 = vmatprep.subr.mxu0 0.0
      %234 = vmatpush1.msra.mxu0 0.0
      %235 = vmatprep.subr.mxu0 0.0
      %236 = vmatpush1.msra.mxu0 0.0
      %237 = vmatprep.subr.mxu0 0.0
      %238 = vmatpush1.msra.mxu0 0.0
      %239 = vmatprep.subr.mxu0 0.0
      %240 = vmatpush1.msra.mxu0 0.0
      %241 = vmatprep.subr.mxu0 0.0
      %242 = vmatpush1.msra.mxu0 0.0
      %243 = vmatprep.subr.mxu0 0.0
      %244 = vmatpush1.msra.mxu0 0.0
      %245 = vmatprep.subr.mxu0 0.0
      %246 = vmatpush1.msra.mxu0 0.0
      %247 = vmatprep.subr.mxu0 0.0
      %248 = vmatpush1.msra.mxu0 0.0
      %249 = vmatprep.subr.mxu0 0.0
      %250 = vmatpush1.msra.mxu0 0.0
      %251 = vmatprep.subr.mxu0 0.0
      %252 = vmatpush1.msra.mxu0 0.0
      %253 = vmatprep.subr.mxu0 0.0
      %254 = vmatpush1.msra.mxu0 0.0
      %255 = vmatprep.subr.mxu0 0.0
      %256 = vmatpush1.msra.mxu0 0.0
      %257 = vmatprep.subr.mxu0 0.0
      %258 = vmatpush1.msra.mxu0 0.0
      %259 = vmatprep.subr.mxu0 0.0
      %260 = vmatpush1.msra.mxu0 0.0
      %261 = vmatprep.mubr.f32.mxu0 0.0
      %262 = vmatmul.mubr.f32.gmra.mrb[0].mxu0 %v175
      %v263 = vpop.f32.mrb[0].mxu0
      %v264 = vadd.f32 %v196, %v263
      %v265 = vpop.f32.mrb[0].mxu0
      %266 = vmatprep.mubr.f32.mxu0 0.0
      %267 = vmatmul.mubr.f32.gmra.mrb[0].mxu0 %v176
      %v268 = vpop.f32.mrb[0].mxu0
      %v269 = vadd.f32 %v196, %v268
      %v270 = vpop.f32.mrb[0].mxu0
      %271 = vmatprep.mubr.f32.mxu0 0.0
      %272 = vmatmul.mubr.f32.gmra.mrb[0].mxu0 %v177
      %v273 = vpop.f32.mrb[0].mxu0
      %v274 = vadd.f32 %v196, %v273
      %v275 = vpop.f32.mrb[0].mxu0
      %276 = vmatprep.mubr.f32.mxu0 0.0
      %277 = vmatmul.mubr.f32.gmra.mrb[0].mxu0 %v178
      %v278 = vpop.f32.mrb[0].mxu0
      %v279 = vadd.f32 %v196, %v278
      %v280 = vpop.f32.mrb[0].mxu0
      %281 = vdwg.mxu0
      %v282 = vxor.u32 %v264, 2147483648
      %v283 = vxor.u32 %v269, 2147483648
      %v284 = vxor.u32 %v274, 2147483648
      %v285 = vxor.u32 %v279, 2147483648
      %v286 = vmul.f32 %v282, 1.442695
      %v287 = vpow.pop %v286
      %v288 = vmul.f32 %v283, 1.442695
      %v289 = vpow.pop %v288
      %v290 = vmul.f32 %v284, 1.442695
      %v291 = vpow.pop %v290
      %v292 = vmul.f32 %v285, 1.442695
      %v293 = vpow.pop %v292
      %v294 = vadd.f32 %v287, 1.0
      %v295 = vadd.f32 %v289, 1.0
      %v296 = vadd.f32 %v291, 1.0
      %v297 = vadd.f32 %v293, 1.0
      %v298 = vrcp.pop %v294
      %v299 = vmul.f32 1.0, %v298
      %v300 = vrcp.pop %v295
      %v301 = vmul.f32 1.0, %v300
      %v302 = vrcp.pop %v296
      %v303 = vmul.f32 1.0, %v302
      %v304 = vrcp.pop %v297
      %v305 = vmul.f32 1.0, %v304
      %vm306 = vcmask 261120
      %307 = vst.msk [vmem:[%s173] sm:$0xff] %vm306, %v299
      %308 = vst.msk [vmem:[%s173 + $0x8] sm:$0xff] %vm306, %v301
      %309 = vst.msk [vmem:[%s173 + $0x10] sm:$0xff] %vm306, %v303
      %310 = vst.msk [vmem:[%s173 + $0x18] sm:$0xff] %vm306, %v305
      %s311 = smul.u32 4, %s15
      %p312 = scmp.lt.s32.totalorder %s311, 7
      %s313 = scalar_select %p312, %s311, 7
      %s314 = smul.addr %s313, 8
      %s315 = scalar_lea.vmem %s3, %s314
      // Predicated region
      $region33: #{_confidence_pallas.1} parent=31 // pred_check
        %p316 = pneg %p101
      $region34: #{_confidence_pallas.1} parent=31 // pred_check_branch
        %318 = sbr.rel (%p316) target = $region36
      $region35: #{_confidence_pallas.1} parent=31 // pred_region
        %s319 = smul.u32 4, %s15
      $region36: #{_confidence_pallas.1} parent=31 // pred_fallthru
        _
    $region32: #{_confidence_pallas.1} parent=5 // pred_fallthru
      _
    %p320 = scmp.le.s32.totalorder 2, %s10
    // Predicated region
    $region37: #{_confidence_pallas.1} parent=5 // pred_check
      %p321 = pneg %p320
    $region38: #{_confidence_pallas.1} parent=5 // pred_check_branch
      %323 = sbr.rel (%p321) target = $region40
    $region39: #{_confidence_pallas.1} parent=5 // pred_region
      %s324 = ssub.s32 %s10, 2
      // Predicated region
      $region41: #{_confidence_pallas.1} parent=39 // pred_check
        %p325 = pneg %p107
      $region42: #{_confidence_pallas.1} parent=39 // pred_check_branch
        %327 = sbr.rel (%p325) target = $region44
      $region43: #{_confidence_pallas.1} parent=39 // pred_region
        %s328 = smul.u32 4, %s16
        %p329 = scmp.lt.s32.totalorder %s328, 7
        %s330 = scalar_select %p329, %s328, 7
        %s331 = smul.addr %s330, 8
        %s332 = scalar_lea.vmem %s3, %s331
      $region44: #{_confidence_pallas.1} parent=39 // pred_fallthru
        _
    $region40: #{_confidence_pallas.1} parent=5 // pred_fallthru
      _
  $region6: #{_confidence_pallas.1} parent=0 // loop_footer
    %s14 = sadd.s32 1, %s10
  $region7: #{_confidence_pallas.1} parent=0 // loop_footer_branch
    %9 = sbr.rel target = $region3
  $region8: #{_confidence_pallas.1} parent=0 // loop_exit
    _

</llo_original>
